<compile_context>
chip_gen: v7x
topology: tpu7x:2x2x1
jax: 0.10.0
libtpu: 0.0.40
codegen_flags: <defaults>
</compile_context>

<pallas_src>
import functools

import jax
import jax.numpy as jnp
from jax.experimental import pallas as pl
from jax.experimental.pallas import tpu as pltpu


HID = 128           # padded width of the 64-wide hidden layers
_ALIGN = 16         # batch-tile alignment (sublane friendly for f32 & bf16)
_SPLIT_MIN_B = 512  # only split the batch grid (v7x dual-TC) above this


def _round_up(n, m):
    return ((n + m - 1) // m) * m


def _pad2d(a, rows, cols):
    r, c = a.shape
    return jnp.pad(a, ((0, rows - r), (0, cols - c)))


def _dqn_kernel(x_ref,
                w1_ref, b1_ref,
                w2_ref, b2_ref,
                w3_ref, b3_ref,
                w4_ref, b4_ref,
                o_ref):
    # bf16 MXU operands with f32 accumulation; bias-add / ReLU in bf16;
    # final layer bias-add and store in f32 (lane-dense 128-wide slab).
    x = x_ref[...].astype(jnp.bfloat16)
    h = jnp.dot(x, w1_ref[...], preferred_element_type=jnp.float32)
    h = jnp.maximum(h.astype(jnp.bfloat16) + b1_ref[...], 0.0)
    h = jnp.dot(h, w2_ref[...], preferred_element_type=jnp.float32)
    h = jnp.maximum(h.astype(jnp.bfloat16) + b2_ref[...], 0.0)
    h = jnp.dot(h, w3_ref[...], preferred_element_type=jnp.float32)
    h = jnp.maximum(h.astype(jnp.bfloat16) + b3_ref[...], 0.0)
    out = jnp.dot(h, w4_ref[...], preferred_element_type=jnp.float32) + b4_ref[...]
    o_ref[...] = out.astype(o_ref.dtype)


def prepare_params(params):
    """One-time weight prep: pad hidden/output dims to 128, cast MXU operands
    to bf16.  Do this once (outside the per-step path); the prepared arrays go
    straight into the pallas_call with zero per-call XLA overhead."""
    out_pad = _round_up(params["w4"].shape[1], 128)
    return dict(
        w1=params["w1"].astype(jnp.bfloat16),                          # (S, 128)
        b1=params["b1"].astype(jnp.bfloat16),                          # (1, 128)
        w2=_pad2d(params["w2"], 128, HID).astype(jnp.bfloat16),        # (128, 128)
        b2=_pad2d(params["b2"], 1, HID).astype(jnp.bfloat16),
        w3=_pad2d(params["w3"], HID, HID).astype(jnp.bfloat16),
        b3=_pad2d(params["b3"], 1, HID).astype(jnp.bfloat16),
        w4=_pad2d(params["w4"], HID, out_pad).astype(jnp.bfloat16),    # (128, out_pad)
        b4=_pad2d(params["b4"], 1, out_pad).astype(jnp.float32),       # final bias f32
    )


def _pick_tile(B, batch_tile):
    """Single tile for small batches; split only when work amortizes the
    per-step overhead (pays off on v7x's two TCs, near-free elsewhere)."""
    b_aligned = _round_up(max(B, 1), _ALIGN)
    tile = min(batch_tile, b_aligned)
    if B >= _SPLIT_MIN_B and b_aligned <= batch_tile:
        tile = _round_up(pl.cdiv(B, 2), _ALIGN)
    return max(tile, _ALIGN)


@functools.partial(jax.jit, static_argnames=("action_size", "batch_tile"))
def deep_q_forward(x, prep, *, action_size, batch_tile=1024):
    """x: (B, state_size) f32.  prep: output of prepare_params (padded bf16/f32)."""
    B, S = x.shape
    out_pad = prep["w4"].shape[1]
    tile = _pick_tile(B, batch_tile)
    grid = pl.cdiv(B, tile)           # ragged last block handled by Pallas

    def _full(shape):
        return pl.BlockSpec(shape, lambda i: (0,) * len(shape))

    in_specs = [
        pl.BlockSpec((tile, S), lambda i: (i, 0)),
        _full(prep["w1"].shape), _full(prep["b1"].shape),
        _full(prep["w2"].shape), _full(prep["b2"].shape),
        _full(prep["w3"].shape), _full(prep["b3"].shape),
        _full(prep["w4"].shape), _full(prep["b4"].shape),
    ]
    out_spec = pl.BlockSpec((tile, out_pad), lambda i: (i, 0))

    out_padded = pl.pallas_call(
        _dqn_kernel,
        out_shape=jax.ShapeDtypeStruct((B, out_pad), jnp.float32),
        grid_spec=pltpu.PrefetchScalarGridSpec(
            num_scalar_prefetch=0,
            grid=(grid,),
            in_specs=in_specs,
            out_specs=out_spec,
        ),
        compiler_params=pltpu.CompilerParams(
            dimension_semantics=("parallel",)),
    )(x, prep["w1"], prep["b1"], prep["w2"], prep["b2"],
      prep["w3"], prep["b3"], prep["w4"], prep["b4"])

    return out_padded[:, :action_size]


def init_params(key, state_size, action_size):
    """Deterministic init mimicking PyTorch nn.Linear (U[-1/sqrt(fan_in), ...]).

    Weights are stored as (in_features, out_features) — the transpose of
    torch's (out, in) layout — so the kernel computes x @ W directly.
    """
    dims = [(state_size, 128), (128, 64), (64, 64), (64, action_size)]
    params = {}
    for idx, (fan_in, fan_out) in enumerate(dims, start=1):
        key, kw, kb = jax.random.split(key, 3)
        bound = 1.0 / jnp.sqrt(jnp.float32(fan_in))
        params[f"w{idx}"] = jax.random.uniform(
            kw, (fan_in, fan_out), jnp.float32, -bound, bound)
        params[f"b{idx}"] = jax.random.uniform(
            kb, (1, fan_out), jnp.float32, -bound, bound)
    return params


def reference_forward(x, params):
    """Pure-JAX reference mirroring the kernel's exact dtype path
    (bf16 operands, f32 matmul accumulation, bf16 bias-add/ReLU, f32 final)."""
    def hidden(h, w, b):
        y = jnp.dot(h.astype(jnp.bfloat16), w.astype(jnp.bfloat16),
                    preferred_element_type=jnp.float32)
        return jnp.maximum(y.astype(jnp.bfloat16) + b.astype(jnp.bfloat16), 0.0)

    h = hidden(x, params["w1"], params["b1"])
    h = hidden(h, params["w2"], params["b2"])
    h = hidden(h, params["w3"], params["b3"])
    return jnp.dot(h, params["w4"].astype(jnp.bfloat16),
                   preferred_element_type=jnp.float32) + params["b4"]


def reference_forward_f32(x, params):
    """Pure-f32 reference (matches the PyTorch module's math)."""
    h = jnp.maximum(x @ params["w1"] + params["b1"], 0.0)
    h = jnp.maximum(h @ params["w2"] + params["b2"], 0.0)
    h = jnp.maximum(h @ params["w3"] + params["b3"], 0.0)
    return h @ params["w4"] + params["b4"]


if __name__ == "__main__":
    state_size = 8
    action_size = 4
    batch = 250          # non-multiple of tile/align: exercises ragged last block

    key = jax.random.PRNGKey(0)
    key, kx = jax.random.split(key)
    x = jax.random.normal(kx, (batch, state_size), jnp.float32)
    params = init_params(key, state_size, action_size)

    prep = prepare_params(params)   # one-time prep, hoisted out of the call path

    out = deep_q_forward(x, prep, action_size=action_size)
    out = jax.block_until_ready(out)
    assert out.shape == (batch, action_size)

    ref_bf16 = reference_forward(x, params)
    ref_f32 = reference_forward_f32(x, params)
    assert jnp.allclose(out, ref_bf16, atol=2e-3, rtol=2e-3), "mismatch vs bf16 reference"
    assert jnp.allclose(out, ref_f32, atol=5e-2, rtol=5e-2), "mismatch vs f32 reference"

    print("KERNEL_OK")
</pallas_src>

<mosaic_0001>
module attributes {stable_mosaic.version = 11 : i64} {
  func.func @_dqn_kernel(%arg0: i32, %arg1: memref<256x8xf32, #tpu.memory_space<vmem>>, %arg2: memref<8x128xbf16, #tpu.memory_space<vmem>>, %arg3: memref<1x128xbf16, #tpu.memory_space<vmem>>, %arg4: memref<128x128xbf16, #tpu.memory_space<vmem>>, %arg5: memref<1x128xbf16, #tpu.memory_space<vmem>>, %arg6: memref<128x128xbf16, #tpu.memory_space<vmem>>, %arg7: memref<1x128xbf16, #tpu.memory_space<vmem>>, %arg8: memref<128x128xbf16, #tpu.memory_space<vmem>>, %arg9: memref<1x128xf32, #tpu.memory_space<vmem>>, %arg10: memref<256x128xf32, #tpu.memory_space<vmem>>) attributes {dimension_semantics = [#tpu.dimension_semantics<parallel>], iteration_bounds = array<i64: 1>, scalar_prefetch = 0 : i64, scratch_operands = 0 : i64, tpu.core_type = #tpu.core_type<tc>, window_params = [{transform_indices = @transform_0, window_bounds = array<i64: 256, 8>}, {pipeline_mode = #tpu.pipeline_mode<synchronous>, transform_indices = @transform_1, window_bounds = array<i64: 8, 128>}, {pipeline_mode = #tpu.pipeline_mode<synchronous>, transform_indices = @transform_2, window_bounds = array<i64: 1, 128>}, {pipeline_mode = #tpu.pipeline_mode<synchronous>, transform_indices = @transform_3, window_bounds = array<i64: 128, 128>}, {pipeline_mode = #tpu.pipeline_mode<synchronous>, transform_indices = @transform_4, window_bounds = array<i64: 1, 128>}, {pipeline_mode = #tpu.pipeline_mode<synchronous>, transform_indices = @transform_5, window_bounds = array<i64: 128, 128>}, {pipeline_mode = #tpu.pipeline_mode<synchronous>, transform_indices = @transform_6, window_bounds = array<i64: 1, 128>}, {pipeline_mode = #tpu.pipeline_mode<synchronous>, transform_indices = @transform_7, window_bounds = array<i64: 128, 128>}, {pipeline_mode = #tpu.pipeline_mode<synchronous>, transform_indices = @transform_8, window_bounds = array<i64: 1, 128>}, {transform_indices = @transform_9, window_bounds = array<i64: 256, 128>}]} {
    %c0 = arith.constant 0 : index
    %c0_0 = arith.constant 0 : index
    %0 = vector.load %arg1[%c0, %c0_0] : memref<256x8xf32, #tpu.memory_space<vmem>>, vector<256x8xf32>
    %1 = arith.truncf %0 : vector<256x8xf32> to vector<256x8xbf16>
    %c0_1 = arith.constant 0 : index
    %c0_2 = arith.constant 0 : index
    %2 = vector.load %arg2[%c0_1, %c0_2] : memref<8x128xbf16, #tpu.memory_space<vmem>>, vector<8x128xbf16>
    %cst = arith.constant dense<0.000000e+00> : vector<256x128xf32>
    %3 = tpu.matmul %1, %2, %cst {dimension_numbers = #tpu.dot_dimension_numbers<[1], [0], [0], [1], [0, 0, 1, 1], [], []>} : vector<256x8xbf16>, vector<8x128xbf16>, vector<256x128xf32> -> vector<256x128xf32>
    %4 = arith.truncf %3 : vector<256x128xf32> to vector<256x128xbf16>
    %c0_3 = arith.constant 0 : index
    %c0_4 = arith.constant 0 : index
    %5 = vector.load %arg3[%c0_3, %c0_4] : memref<1x128xbf16, #tpu.memory_space<vmem>>, vector<1x128xbf16>
    %6 = vector.broadcast %5 : vector<1x128xbf16> to vector<256x128xbf16>
    %7 = arith.addf %4, %6 : vector<256x128xbf16>
    %cst_5 = arith.constant 0.000000e+00 : bf16
    %8 = vector.broadcast %cst_5 : bf16 to vector<256x128xbf16>
    %9 = arith.maximumf %7, %8 : vector<256x128xbf16>
    %c0_6 = arith.constant 0 : index
    %c0_7 = arith.constant 0 : index
    %10 = vector.load %arg4[%c0_6, %c0_7] : memref<128x128xbf16, #tpu.memory_space<vmem>>, vector<128x128xbf16>
    %cst_8 = arith.constant dense<0.000000e+00> : vector<256x128xf32>
    %11 = tpu.matmul %9, %10, %cst_8 {dimension_numbers = #tpu.dot_dimension_numbers<[1], [0], [0], [1], [0, 0, 1, 1], [], []>} : vector<256x128xbf16>, vector<128x128xbf16>, vector<256x128xf32> -> vector<256x128xf32>
    %12 = arith.truncf %11 : vector<256x128xf32> to vector<256x128xbf16>
    %c0_9 = arith.constant 0 : index
    %c0_10 = arith.constant 0 : index
    %13 = vector.load %arg5[%c0_9, %c0_10] : memref<1x128xbf16, #tpu.memory_space<vmem>>, vector<1x128xbf16>
    %14 = vector.broadcast %13 : vector<1x128xbf16> to vector<256x128xbf16>
    %15 = arith.addf %12, %14 : vector<256x128xbf16>
    %cst_11 = arith.constant 0.000000e+00 : bf16
    %16 = vector.broadcast %cst_11 : bf16 to vector<256x128xbf16>
    %17 = arith.maximumf %15, %16 : vector<256x128xbf16>
    %c0_12 = arith.constant 0 : index
    %c0_13 = arith.constant 0 : index
    %18 = vector.load %arg6[%c0_12, %c0_13] : memref<128x128xbf16, #tpu.memory_space<vmem>>, vector<128x128xbf16>
    %cst_14 = arith.constant dense<0.000000e+00> : vector<256x128xf32>
    %19 = tpu.matmul %17, %18, %cst_14 {dimension_numbers = #tpu.dot_dimension_numbers<[1], [0], [0], [1], [0, 0, 1, 1], [], []>} : vector<256x128xbf16>, vector<128x128xbf16>, vector<256x128xf32> -> vector<256x128xf32>
    %20 = arith.truncf %19 : vector<256x128xf32> to vector<256x128xbf16>
    %c0_15 = arith.constant 0 : index
    %c0_16 = arith.constant 0 : index
    %21 = vector.load %arg7[%c0_15, %c0_16] : memref<1x128xbf16, #tpu.memory_space<vmem>>, vector<1x128xbf16>
    %22 = vector.broadcast %21 : vector<1x128xbf16> to vector<256x128xbf16>
    %23 = arith.addf %20, %22 : vector<256x128xbf16>
    %cst_17 = arith.constant 0.000000e+00 : bf16
    %24 = vector.broadcast %cst_17 : bf16 to vector<256x128xbf16>
    %25 = arith.maximumf %23, %24 : vector<256x128xbf16>
    %c0_18 = arith.constant 0 : index
    %c0_19 = arith.constant 0 : index
    %26 = vector.load %arg8[%c0_18, %c0_19] : memref<128x128xbf16, #tpu.memory_space<vmem>>, vector<128x128xbf16>
    %cst_20 = arith.constant dense<0.000000e+00> : vector<256x128xf32>
    %27 = tpu.matmul %25, %26, %cst_20 {dimension_numbers = #tpu.dot_dimension_numbers<[1], [0], [0], [1], [0, 0, 1, 1], [], []>} : vector<256x128xbf16>, vector<128x128xbf16>, vector<256x128xf32> -> vector<256x128xf32>
    %c0_21 = arith.constant 0 : index
    %c0_22 = arith.constant 0 : index
    %28 = vector.load %arg9[%c0_21, %c0_22] : memref<1x128xf32, #tpu.memory_space<vmem>>, vector<1x128xf32>
    %29 = vector.broadcast %28 : vector<1x128xf32> to vector<256x128xf32>
    %30 = arith.addf %27, %29 : vector<256x128xf32>
    %c0_23 = arith.constant 0 : index
    %c0_24 = arith.constant 0 : index
    %31 = vector.load %arg10[%c0_23, %c0_24] : memref<256x128xf32, #tpu.memory_space<vmem>>, vector<256x128xf32>
    tpu.vector_store %arg10[%c0_23, %c0_24], %30 {strides = array<i32>} : memref<256x128xf32, #tpu.memory_space<vmem>>, vector<256x128xf32>,
    return
  }
  func.func @transform_0(%arg0: i32) -> (i32, i32) {
    %c0_i32 = arith.constant 0 : i32
    %c0_i32_0 = arith.constant 0 : i32
    return %arg0, %c0_i32 : i32, i32
  }
  func.func @transform_1(%arg0: i32) -> (i32, i32) {
    %c0_i32 = arith.constant 0 : i32
    %c0_i32_0 = arith.constant 0 : i32
    %c0_i32_1 = arith.constant 0 : i32
    return %c0_i32, %c0_i32_0 : i32, i32
  }
  func.func @transform_2(%arg0: i32) -> (i32, i32) {
    %c0_i32 = arith.constant 0 : i32
    %c0_i32_0 = arith.constant 0 : i32
    %c0_i32_1 = arith.constant 0 : i32
    return %c0_i32, %c0_i32_0 : i32, i32
  }
  func.func @transform_3(%arg0: i32) -> (i32, i32) {
    %c0_i32 = arith.constant 0 : i32
    %c0_i32_0 = arith.constant 0 : i32
    %c0_i32_1 = arith.constant 0 : i32
    return %c0_i32, %c0_i32_0 : i32, i32
  }
  func.func @transform_4(%arg0: i32) -> (i32, i32) {
    %c0_i32 = arith.constant 0 : i32
    %c0_i32_0 = arith.constant 0 : i32
    %c0_i32_1 = arith.constant 0 : i32
    return %c0_i32, %c0_i32_0 : i32, i32
  }
  func.func @transform_5(%arg0: i32) -> (i32, i32) {
    %c0_i32 = arith.constant 0 : i32
    %c0_i32_0 = arith.constant 0 : i32
    %c0_i32_1 = arith.constant 0 : i32
    return %c0_i32, %c0_i32_0 : i32, i32
  }
  func.func @transform_6(%arg0: i32) -> (i32, i32) {
    %c0_i32 = arith.constant 0 : i32
    %c0_i32_0 = arith.constant 0 : i32
    %c0_i32_1 = arith.constant 0 : i32
    return %c0_i32, %c0_i32_0 : i32, i32
  }
  func.func @transform_7(%arg0: i32) -> (i32, i32) {
    %c0_i32 = arith.constant 0 : i32
    %c0_i32_0 = arith.constant 0 : i32
    %c0_i32_1 = arith.constant 0 : i32
    return %c0_i32, %c0_i32_0 : i32, i32
  }
  func.func @transform_8(%arg0: i32) -> (i32, i32) {
    %c0_i32 = arith.constant 0 : i32
    %c0_i32_0 = arith.constant 0 : i32
    %c0_i32_1 = arith.constant 0 : i32
    return %c0_i32, %c0_i32_0 : i32, i32
  }
  func.func @transform_9(%arg0: i32) -> (i32, i32) {
    %c0_i32 = arith.constant 0 : i32
    %c0_i32_0 = arith.constant 0 : i32
    return %arg0, %c0_i32 : i32, i32
  }
}

</mosaic_0001>

<llo_original>
// kernel: deep_q_forward.1
$region0: #{deep_q_forward.1}
  #allocation0 [shape = 'u32[]', space=smem, size = 0x4, offset = 0x4, fixed_abs, tag = 'smem constant byte address 0x4 - core index']
  #allocation1 [shape = 'u32[144,128]{1,0:T(1,128)}', space=vmem, size = 0x12000, scoped, tag = 'internal scratch']
  %s0 = inlined_call_operand.vmem [shape: f32[250,8], index: 0, kind: input, shape index: {}]
  %s1 = inlined_call_operand.vmem [shape: bf16[8,128], index: 1, kind: input, shape index: {}]
  %s2 = inlined_call_operand.vmem [shape: bf16[1,128], index: 2, kind: input, shape index: {}]
  %s3 = inlined_call_operand.vmem [shape: bf16[128,128], index: 3, kind: input, shape index: {}]
  %s4 = inlined_call_operand.vmem [shape: bf16[1,128], index: 4, kind: input, shape index: {}]
  %s5 = inlined_call_operand.vmem [shape: bf16[128,128], index: 5, kind: input, shape index: {}]
  %s6 = inlined_call_operand.vmem [shape: bf16[1,128], index: 6, kind: input, shape index: {}]
  %s7 = inlined_call_operand.vmem [shape: bf16[128,128], index: 7, kind: input, shape index: {}]
  %s8 = inlined_call_operand.vmem [shape: f32[1,128], index: 8, kind: input, shape index: {}]
  %s9 = inlined_call_operand.vmem [shape: f32[250,128], index: 9, kind: output, shape index: {}]
  %s10 = sld [smem:[#allocation0]]
  $region46: #{deep_q_forward.1} parent=0
    _
  %s12 = ssub.s32 1, %s10
  %s13 = scalar_select 0, %s12, %s10
  // Predicated region
  $region2: #{deep_q_forward.1} parent=0 // pred_check
    _
  $region3: #{deep_q_forward.1} parent=0 // pred_check_branch
    %15 = sbr.rel (0) target = $region5
  $region4: #{deep_q_forward.1} parent=0 // pred_region
    _
  $region5: #{deep_q_forward.1} parent=0 // pred_fallthru
    _
  // Predicated region
  $region6: #{deep_q_forward.1} parent=0 // pred_check
    _
  $region7: #{deep_q_forward.1} parent=0 // pred_check_branch
    %17 = sbr.rel (0) target = $region9
  $region8: #{deep_q_forward.1} parent=0 // pred_region
    _
  $region9: #{deep_q_forward.1} parent=0 // pred_fallthru
    _
  // Predicated region
  $region10: #{deep_q_forward.1} parent=0 // pred_check
    _
  $region11: #{deep_q_forward.1} parent=0 // pred_check_branch
    %19 = sbr.rel (0) target = $region13
  $region12: #{deep_q_forward.1} parent=0 // pred_region
    _
  $region13: #{deep_q_forward.1} parent=0 // pred_fallthru
    _
  // Predicated region
  $region14: #{deep_q_forward.1} parent=0 // pred_check
    _
  $region15: #{deep_q_forward.1} parent=0 // pred_check_branch
    %21 = sbr.rel (0) target = $region17
  $region16: #{deep_q_forward.1} parent=0 // pred_region
    _
  $region17: #{deep_q_forward.1} parent=0 // pred_fallthru
    _
  // Predicated region
  $region18: #{deep_q_forward.1} parent=0 // pred_check
    _
  $region19: #{deep_q_forward.1} parent=0 // pred_check_branch
    %23 = sbr.rel (0) target = $region21
  $region20: #{deep_q_forward.1} parent=0 // pred_region
    _
  $region21: #{deep_q_forward.1} parent=0 // pred_fallthru
    _
  // Predicated region
  $region22: #{deep_q_forward.1} parent=0 // pred_check
    _
  $region23: #{deep_q_forward.1} parent=0 // pred_check_branch
    %25 = sbr.rel (0) target = $region25
  $region24: #{deep_q_forward.1} parent=0 // pred_region
    _
  $region25: #{deep_q_forward.1} parent=0 // pred_fallthru
    _
  // Predicated region
  $region26: #{deep_q_forward.1} parent=0 // pred_check
    _
  $region27: #{deep_q_forward.1} parent=0 // pred_check_branch
    %27 = sbr.rel (0) target = $region29
  $region28: #{deep_q_forward.1} parent=0 // pred_region
    _
  $region29: #{deep_q_forward.1} parent=0 // pred_fallthru
    _
  // Predicated region
  $region30: #{deep_q_forward.1} parent=0 // pred_check
    _
  $region31: #{deep_q_forward.1} parent=0 // pred_check_branch
    %29 = sbr.rel (0) target = $region33
  $region32: #{deep_q_forward.1} parent=0 // pred_region
    _
  $region33: #{deep_q_forward.1} parent=0 // pred_fallthru
    _
  // Predicated region
  $region34: #{deep_q_forward.1} parent=0 // pred_check
    _
  $region35: #{deep_q_forward.1} parent=0 // pred_check_branch
    %31 = sbr.rel (0) target = $region37
  $region36: #{deep_q_forward.1} parent=0 // pred_region
    _
  $region37: #{deep_q_forward.1} parent=0 // pred_fallthru
    _
  %v33 = vld [vmem:[%s0] sm:$0xff]
  %v34 = vld [vmem:[%s0 + $0x8] sm:$0xff]
  %v35 = vld [vmem:[%s0 + $0x10] sm:$0xff]
  %v36 = vld [vmem:[%s0 + $0x18] sm:$0xff]
  %v37 = vld [vmem:[%s0 + $0x20] sm:$0xff]
  %v38 = vld [vmem:[%s0 + $0x28] sm:$0xff]
  %v39 = vld [vmem:[%s0 + $0x30] sm:$0xff]
  %v40 = vld [vmem:[%s0 + $0x38] sm:$0xff]
  %v41 = vld [vmem:[%s0 + $0x40] sm:$0xff]
  %v42 = vld [vmem:[%s0 + $0x48] sm:$0xff]
  %v43 = vld [vmem:[%s0 + $0x50] sm:$0xff]
  %v44 = vld [vmem:[%s0 + $0x58] sm:$0xff]
  %v45 = vld [vmem:[%s0 + $0x60] sm:$0xff]
  %v46 = vld [vmem:[%s0 + $0x68] sm:$0xff]
  %v47 = vld [vmem:[%s0 + $0x70] sm:$0xff]
  %v48 = vld [vmem:[%s0 + $0x78] sm:$0xff]
  %v49 = vld [vmem:[%s0 + $0x80] sm:$0xff]
  %v50 = vld [vmem:[%s0 + $0x88] sm:$0xff]
  %v51 = vld [vmem:[%s0 + $0x90] sm:$0xff]
  %v52 = vld [vmem:[%s0 + $0x98] sm:$0xff]
  %v53 = vld [vmem:[%s0 + $0xa0] sm:$0xff]
  %v54 = vld [vmem:[%s0 + $0xa8] sm:$0xff]
  %v55 = vld [vmem:[%s0 + $0xb0] sm:$0xff]
  %v56 = vld [vmem:[%s0 + $0xb8] sm:$0xff]
  %v57 = vld [vmem:[%s0 + $0xc0] sm:$0xff]
  %v58 = vld [vmem:[%s0 + $0xc8] sm:$0xff]
  %v59 = vld [vmem:[%s0 + $0xd0] sm:$0xff]
  %v60 = vld [vmem:[%s0 + $0xd8] sm:$0xff]
  %v61 = vld [vmem:[%s0 + $0xe0] sm:$0xff]
  %v62 = vld [vmem:[%s0 + $0xe8] sm:$0xff]
  %v63 = vld [vmem:[%s0 + $0xf0] sm:$0xff]
  %v64 = vld [vmem:[%s0 + $0xf8] sm:$0xff]
  %v65 = vpack.c.bf16 %v34, %v33
  %v66 = vpack.c.bf16 %v36, %v35
  %v67 = vpack.c.bf16 %v38, %v37
  %v68 = vpack.c.bf16 %v40, %v39
  %v69 = vpack.c.bf16 %v42, %v41
  %v70 = vpack.c.bf16 %v44, %v43
  %v71 = vpack.c.bf16 %v46, %v45
  %v72 = vpack.c.bf16 %v48, %v47
  %v73 = vpack.c.bf16 %v50, %v49
  %v74 = vpack.c.bf16 %v52, %v51
  %v75 = vpack.c.bf16 %v54, %v53
  %v76 = vpack.c.bf16 %v56, %v55
  %v77 = vpack.c.bf16 %v58, %v57
  %v78 = vpack.c.bf16 %v60, %v59
  %v79 = vpack.c.bf16 %v62, %v61
  %v80 = vpack.c.bf16 %v64, %v63
  %v81 = vld [vmem:[%s1] sm:$0xf]
  %vm82 = vcmask 64512
  %v84 = vsel %vm82, %v65, 0
  %v87 = vsel %vm82, %v66, 0
  %v90 = vsel %vm82, %v67, 0
  %v93 = vsel %vm82, %v68, 0
  %v96 = vsel %vm82, %v69, 0
  %v99 = vsel %vm82, %v70, 0
  %v102 = vsel %vm82, %v71, 0
  %v105 = vsel %vm82, %v72, 0
  %v108 = vsel %vm82, %v73, 0
  %v111 = vsel %vm82, %v74, 0
  %v114 = vsel %vm82, %v75, 0
  %v117 = vsel %vm82, %v76, 0
  %v120 = vsel %vm82, %v77, 0
  %v123 = vsel %vm82, %v78, 0
  %v126 = vsel %vm82, %v79, 0
  %v129 = vsel %vm82, %v80, 0
  %vm131 = vcmask 1043456
  %v133 = vsel %vm131, %v81, 0
  %135 = vmatprep.subr.bf16.mxu0 0
  %136 = vmatpush1.bf16.msra.mxu0 %v133
  %137 = vmatprep.subr.bf16.mxu0 0
  %138 = vmatpush1.bf16.msra.mxu0 0
  %139 = vmatprep.subr.bf16.mxu0 0
  %140 = vmatpush1.bf16.msra.mxu0 0
  %141 = vmatprep.subr.bf16.mxu0 0
  %142 = vmatpush1.bf16.msra.mxu0 0
  %143 = vmatprep.subr.bf16.mxu0 0
  %144 = vmatpush1.bf16.msra.mxu0 0
  %145 = vmatprep.subr.bf16.mxu0 0
  %146 = vmatpush1.bf16.msra.mxu0 0
  %147 = vmatprep.subr.bf16.mxu0 0
  %148 = vmatpush1.bf16.msra.mxu0 0
  %149 = vmatprep.subr.bf16.mxu0 0
  %150 = vmatpush1.bf16.msra.mxu0 0
  %151 = vmatprep.subr.bf16.mxu0 0
  %152 = vmatpush1.bf16.msra.mxu0 0
  %153 = vmatprep.subr.bf16.mxu0 0
  %154 = vmatpush1.bf16.msra.mxu0 0
  %155 = vmatprep.subr.bf16.mxu0 0
  %156 = vmatpush1.bf16.msra.mxu0 0
  %157 = vmatprep.subr.bf16.mxu0 0
  %158 = vmatpush1.bf16.msra.mxu0 0
  %159 = vmatprep.subr.bf16.mxu0 0
  %160 = vmatpush1.bf16.msra.mxu0 0
  %161 = vmatprep.subr.bf16.mxu0 0
  %162 = vmatpush1.bf16.msra.mxu0 0
  %163 = vmatprep.subr.bf16.mxu0 0
  %164 = vmatpush1.bf16.msra.mxu0 0
  %165 = vmatprep.subr.bf16.mxu0 0
  %166 = vmatpush1.bf16.msra.mxu0 0
  %167 = vmatprep.mubr.bf16.mxu0 0
  %168 = vmatmul.mubr.bf16.gmra.mrb[0].mxu0 %v84
  %v169 = vpop.f32.mrb[0].mxu0
  %v170 = vadd.f32 0.0, %v169
  %v171 = vpop.f32.mrb[0].mxu0
  %v172 = vpop.f32.mrb[0].mxu0
  %v173 = vadd.f32 0.0, %v172
  %v174 = vpop.f32.mrb[0].mxu0
  %175 = vmatprep.mubr.bf16.mxu0 0
  %176 = vmatmul.mubr.bf16.gmra.mrb[0].mxu0 %v87
  %v177 = vpop.f32.mrb[0].mxu0
  %v178 = vadd.f32 0.0, %v177
  %v179 = vpop.f32.mrb[0].mxu0
  %v180 = vpop.f32.mrb[0].mxu0
  %v181 = vadd.f32 0.0, %v180
  %v182 = vpop.f32.mrb[0].mxu0
  %183 = vmatprep.mubr.bf16.mxu0 0
  %184 = vmatmul.mubr.bf16.gmra.mrb[0].mxu0 %v90
  %v185 = vpop.f32.mrb[0].mxu0
  %v186 = vadd.f32 0.0, %v185
  %v187 = vpop.f32.mrb[0].mxu0
  %v188 = vpop.f32.mrb[0].mxu0
  %v189 = vadd.f32 0.0, %v188
  %v190 = vpop.f32.mrb[0].mxu0
  %191 = vmatprep.mubr.bf16.mxu0 0
  %192 = vmatmul.mubr.bf16.gmra.mrb[0].mxu0 %v93
  %v193 = vpop.f32.mrb[0].mxu0
  %v194 = vadd.f32 0.0, %v193
  %v195 = vpop.f32.mrb[0].mxu0
  %v196 = vpop.f32.mrb[0].mxu0
  %v197 = vadd.f32 0.0, %v196
  %v198 = vpop.f32.mrb[0].mxu0
  %199 = vmatprep.mubr.bf16.mxu0 0
  %200 = vmatmul.mubr.bf16.gmra.mrb[0].mxu0 %v96
  %v201 = vpop.f32.mrb[0].mxu0
  %v202 = vadd.f32 0.0, %v201
  %v203 = vpop.f32.mrb[0].mxu0
  %v204 = vpop.f32.mrb[0].mxu0
  %v205 = vadd.f32 0.0, %v204
  %v206 = vpop.f32.mrb[0].mxu0
  %207 = vmatprep.mubr.bf16.mxu0 0
  %208 = vmatmul.mubr.bf16.gmra.mrb[0].mxu0 %v99
  %v209 = vpop.f32.mrb[0].mxu0
  %v210 = vadd.f32 0.0, %v209
  %v211 = vpop.f32.mrb[0].mxu0
  %v212 = vpop.f32.mrb[0].mxu0
  %v213 = vadd.f32 0.0, %v212
  %v214 = vpop.f32.mrb[0].mxu0
  %215 = vmatprep.mubr.bf16.mxu0 0
  %216 = vmatmul.mubr.bf16.gmra.mrb[0].mxu0 %v102
  %v217 = vpop.f32.mrb[0].mxu0
  %v218 = vadd.f32 0.0, %v217
  %v219 = vpop.f32.mrb[0].mxu0
  %v220 = vpop.f32.mrb[0].mxu0
  %v221 = vadd.f32 0.0, %v220
  %v222 = vpop.f32.mrb[0].mxu0
  %223 = vmatprep.mubr.bf16.mxu0 0
  %224 = vmatmul.mubr.bf16.gmra.mrb[0].mxu0 %v105
  %v225 = vpop.f32.mrb[0].mxu0
  %v226 = vadd.f32 0.0, %v225
  %v227 = vpop.f32.mrb[0].mxu0
  %v228 = vpop.f32.mrb[0].mxu0
  %v229 = vadd.f32 0.0, %v228
  %v230 = vpop.f32.mrb[0].mxu0
  %231 = vmatprep.mubr.bf16.mxu0 0
  %232 = vmatmul.mubr.bf16.gmra.mrb[0].mxu0 %v108
  %v233 = vpop.f32.mrb[0].mxu0
  %v234 = vadd.f32 0.0, %v233
  %v235 = vpop.f32.mrb[0].mxu0
  %v236 = vpop.f32.mrb[0].mxu0
  %v237 = vadd.f32 0.0, %v236
  %v238 = vpop.f32.mrb[0].mxu0
  %239 = vmatprep.mubr.bf16.mxu0 0
  %240 = vmatmul.mubr.bf16.gmra.mrb[0].mxu0 %v111
  %v241 = vpop.f32.mrb[0].mxu0
  %v242 = vadd.f32 0.0, %v241
  %v243 = vpop.f32.mrb[0].mxu0
  %v244 = vpop.f32.mrb[0].mxu0
  %v245 = vadd.f32 0.0, %v244
  %v246 = vpop.f32.mrb[0].mxu0
  %247 = vmatprep.mubr.bf16.mxu0 0
  %248 = vmatmul.mubr.bf16.gmra.mrb[0].mxu0 %v114
  %v249 = vpop.f32.mrb[0].mxu0
  %v250 = vadd.f32 0.0, %v249
  %v251 = vpop.f32.mrb[0].mxu0
  %v252 = vpop.f32.mrb[0].mxu0
  %v253 = vadd.f32 0.0, %v252
  %v254 = vpop.f32.mrb[0].mxu0
  %255 = vmatprep.mubr.bf16.mxu0 0
  %256 = vmatmul.mubr.bf16.gmra.mrb[0].mxu0 %v117
  %v257 = vpop.f32.mrb[0].mxu0
  %v258 = vadd.f32 0.0, %v257
  %v259 = vpop.f32.mrb[0].mxu0
  %v260 = vpop.f32.mrb[0].mxu0
  %v261 = vadd.f32 0.0, %v260
  %v262 = vpop.f32.mrb[0].mxu0
  %263 = vmatprep.mubr.bf16.mxu0 0
  %264 = vmatmul.mubr.bf16.gmra.mrb[0].mxu0 %v120
  %v265 = vpop.f32.mrb[0].mxu0
  %v266 = vadd.f32 0.0, %v265
  %v267 = vpop.f32.mrb[0].mxu0
  %v268 = vpop.f32.mrb[0].mxu0
  %v269 = vadd.f32 0.0, %v268
  %v270 = vpop.f32.mrb[0].mxu0
  %271 = vmatprep.mubr.bf16.mxu0 0
  %272 = vmatmul.mubr.bf16.gmra.mrb[0].mxu0 %v123
  %v273 = vpop.f32.mrb[0].mxu0
  %v274 = vadd.f32 0.0, %v273
  %v275 = vpop.f32.mrb[0].mxu0
  %v276 = vpop.f32.mrb[0].mxu0
  %v277 = vadd.f32 0.0, %v276
  %v278 = vpop.f32.mrb[0].mxu0
  %279 = vmatprep.mubr.bf16.mxu0 0
  %280 = vmatmul.mubr.bf16.gmra.mrb[0].mxu0 %v126
  %v281 = vpop.f32.mrb[0].mxu0
  %v282 = vadd.f32 0.0, %v281
  %v283 = vpop.f32.mrb[0].mxu0
  %v284 = vpop.f32.mrb[0].mxu0
  %v285 = vadd.f32 0.0, %v284
  %v286 = vpop.f32.mrb[0].mxu0
  %287 = vmatprep.mubr.bf16.mxu0 0
  %288 = vmatmul.mubr.bf16.gmra.mrb[0].mxu0 %v129
  %v289 = vpop.f32.mrb[0].mxu0
  %v290 = vadd.f32 0.0, %v289
  %v291 = vpop.f32.mrb[0].mxu0
  %v292 = vpop.f32.mrb[0].mxu0
  %v293 = vadd.f32 0.0, %v292
  %v294 = vpop.f32.mrb[0].mxu0
  %295 = vdwg.mxu0
  %v296 = vpack.c.bf16 %v173, %v170
  %v297 = vpack.c.bf16 %v181, %v178
  %v298 = vpack.c.bf16 %v189, %v186
  %v299 = vpack.c.bf16 %v197, %v194
  %v300 = vpack.c.bf16 %v205, %v202
  %v301 = vpack.c.bf16 %v213, %v210
  %v302 = vpack.c.bf16 %v221, %v218
  %v303 = vpack.c.bf16 %v229, %v226
  %v304 = vpack.c.bf16 %v237, %v234
  %v305 = vpack.c.bf16 %v245, %v242
  %v306 = vpack.c.bf16 %v253, %v250
  %v307 = vpack.c.bf16 %v261, %v258
  %v308 = vpack.c.bf16 %v269, %v266
  %v309 = vpack.c.bf16 %v277, %v274
  %v310 = vpack.c.bf16 %v285, %v282
  %v311 = vpack.c.bf16 %v293, %v290
  %v312 = vld [vmem:[%s2] sm:$0x1]
  %v314 = vpack.i.b16 %v312, %v312
  %v316 = vlaneseq
  %v317 = vshrl.u32 %v316, 7
  %v318 = vsub.s32 0, %v317
  %v319 = vrot.slane %v314, %v318
  %v320 = vadd.bf16 %v296, %v319
  %v321 = vadd.bf16 %v297, %v319
  %v322 = vadd.bf16 %v298, %v319
  %v323 = vadd.bf16 %v299, %v319
  %v324 = vadd.bf16 %v300, %v319
  %v325 = vadd.bf16 %v301, %v319
  %v326 = vadd.bf16 %v302, %v319
  %v327 = vadd.bf16 %v303, %v319
  %v328 = vadd.bf16 %v304, %v319
  %v329 = vadd.bf16 %v305, %v319
  %v330 = vadd.bf16 %v306, %v319
  %v331 = vadd.bf16 %v307, %v319
  %v332 = vadd.bf16 %v308, %v319
  %v333 = vadd.bf16 %v309, %v319
  %v334 = vadd.bf16 %v310, %v319
  %v335 = vadd.bf16 %v311, %v319
  %v336 = vmax.bf16 %v320, 0
  %v337 = vmax.bf16 %v321, 0
  %v338 = vmax.bf16 %v322, 0
  %v339 = vmax.bf16 %v323, 0
  %v340 = vmax.bf16 %v324, 0
  %v341 = vmax.bf16 %v325, 0
  %v342 = vmax.bf16 %v326, 0
  %v343 = vmax.bf16 %v327, 0
  %v344 = vmax.bf16 %v328, 0
  %v345 = vmax.bf16 %v329, 0
  %v346 = vmax.bf16 %v330, 0
  %v347 = vmax.bf16 %v331, 0
  %v348 = vmax.bf16 %v332, 0
  %v349 = vmax.bf16 %v333, 0
  %v350 = vmax.bf16 %v334, 0
  %v351 = vmax.bf16 %v335, 0
  %v352 = vld [vmem:[%s3] sm:$0xf]
  %v353 = vld [vmem:[%s3 + $0x4] sm:$0xf]
  %v354 = vld [vmem:[%s3 + $0x8] sm:$0xf]
  %v355 = vld [vmem:[%s3 + $0xc] sm:$0xf]
  %v356 = vld [vmem:[%s3 + $0x10] sm:$0xf]
  %v357 = vld [vmem:[%s3 + $0x14] sm:$0xf]
  %v358 = vld [vmem:[%s3 + $0x18] sm:$0xf]
  %v359 = vld [vmem:[%s3 + $0x1c] sm:$0xf]
  %v360 = vld [vmem:[%s3 + $0x20] sm:$0xf]
  %v361 = vld [vmem:[%s3 + $0x24] sm:$0xf]
  %v362 = vld [vmem:[%s3 + $0x28] sm:$0xf]
  %v363 = vld [vmem:[%s3 + $0x2c] sm:$0xf]
  %v364 = vld [vmem:[%s3 + $0x30] sm:$0xf]
  %v365 = vld [vmem:[%s3 + $0x34] sm:$0xf]
  %v366 = vld [vmem:[%s3 + $0x38] sm:$0xf]
  %v367 = vld [vmem:[%s3 + $0x3c] sm:$0xf]
  %v384 = vunpack.c.l.b16 %v352
  %v385 = vunpack.c.l.b16 %v353
  %v386 = vunpack.c.l.b16 %v354
  %v387 = vunpack.c.l.b16 %v355
  %v388 = vunpack.c.l.b16 %v356
  %v389 = vunpack.c.l.b16 %v357
  %v390 = vunpack.c.l.b16 %v358
  %v391 = vunpack.c.l.b16 %v359
  %v392 = vunpack.c.l.b16 %v360
  %v393 = vunpack.c.l.b16 %v361
  %v394 = vunpack.c.l.b16 %v362
  %v395 = vunpack.c.l.b16 %v363
  %v396 = vunpack.c.l.b16 %v364
  %v397 = vunpack.c.l.b16 %v365
  %v398 = vunpack.c.l.b16 %v366
  %v399 = vunpack.c.l.b16 %v367
  %v400 = vpack.c.b16 %v385, %v384
  %v401 = vpack.c.b16 %v387, %v386
  %v402 = vpack.c.b16 %v389, %v388
  %v403 = vpack.c.b16 %v391, %v390
  %v404 = vpack.c.b16 %v393, %v392
  %v405 = vpack.c.b16 %v395, %v394
  %v406 = vpack.c.b16 %v397, %v396
  %v407 = vpack.c.b16 %v399, %v398
  %416 = vmatprep.subr.bf16.mxu0 0
  %417 = vmatpush1.bf16.msra.mxu0 %v400
  %418 = vmatprep.subr.bf16.mxu0 0
  %419 = vmatpush1.bf16.msra.mxu0 %v401
  %420 = vmatprep.subr.bf16.mxu0 0
  %421 = vmatpush1.bf16.msra.mxu0 %v402
  %422 = vmatprep.subr.bf16.mxu0 0
  %423 = vmatpush1.bf16.msra.mxu0 %v403
  %424 = vmatprep.subr.bf16.mxu0 0
  %425 = vmatpush1.bf16.msra.mxu0 %v404
  %426 = vmatprep.subr.bf16.mxu0 0
  %427 = vmatpush1.bf16.msra.mxu0 %v405
  %428 = vmatprep.subr.bf16.mxu0 0
  %429 = vmatpush1.bf16.msra.mxu0 %v406
  %430 = vmatprep.subr.bf16.mxu0 0
  %431 = vmatpush1.bf16.msra.mxu0 %v407
  %432 = vmatprep.subr.bf16.mxu0 0
  %433 = vmatpush1.bf16.msra.mxu0 0
  %434 = vmatprep.subr.bf16.mxu0 0
  %435 = vmatpush1.bf16.msra.mxu0 0
  %436 = vmatprep.subr.bf16.mxu0 0
  %437 = vmatpush1.bf16.msra.mxu0 0
  %438 = vmatprep.subr.bf16.mxu0 0
  %439 = vmatpush1.bf16.msra.mxu0 0
  %440 = vmatprep.subr.bf16.mxu0 0
  %441 = vmatpush1.bf16.msra.mxu0 0
  %442 = vmatprep.subr.bf16.mxu0 0
  %443 = vmatpush1.bf16.msra.mxu0 0
  %444 = vmatprep.subr.bf16.mxu0 0
  %445 = vmatpush1.bf16.msra.mxu0 0
  %446 = vmatprep.subr.bf16.mxu0 0
  %447 = vmatpush1.bf16.msra.mxu0 0
  %448 = vmatprep.mubr.bf16.mxu0 0
  %449 = vmatmul.mubr.bf16.gmra.mrb[0].mxu0 %v336
  %v450 = vpop.f32.mrb[0].mxu0
  %v451 = vadd.f32 0.0, %v450
  %v452 = vpop.f32.mrb[0].mxu0
  %v453 = vpop.f32.mrb[0].mxu0
  %v454 = vadd.f32 0.0, %v453
  %v455 = vpop.f32.mrb[0].mxu0
  %456 = vmatprep.mubr.bf16.mxu0 0
  %457 = vmatmul.mubr.bf16.gmra.mrb[0].mxu0 %v337
  %v458 = vpop.f32.mrb[0].mxu0
  %v459 = vadd.f32 0.0, %v458
  %v460 = vpop.f32.mrb[0].mxu0
  %v461 = vpop.f32.mrb[0].mxu0
  %v462 = vadd.f32 0.0, %v461
  %v463 = vpop.f32.mrb[0].mxu0
  %464 = vmatprep.mubr.bf16.mxu0 0
  %465 = vmatmul.mubr.bf16.gmra.mrb[0].mxu0 %v338
  %v466 = vpop.f32.mrb[0].mxu0
  %v467 = vadd.f32 0.0, %v466
  %v468 = vpop.f32.mrb[0].mxu0
  %v469 = vpop.f32.mrb[0].mxu0
  %v470 = vadd.f32 0.0, %v469
  %v471 = vpop.f32.mrb[0].mxu0
  %472 = vmatprep.mubr.bf16.mxu0 0
  %473 = vmatmul.mubr.bf16.gmra.mrb[0].mxu0 %v339
  %v474 = vpop.f32.mrb[0].mxu0
  %v475 = vadd.f32 0.0, %v474
  %v476 = vpop.f32.mrb[0].mxu0
  %v477 = vpop.f32.mrb[0].mxu0
  %v478 = vadd.f32 0.0, %v477
  %v479 = vpop.f32.mrb[0].mxu0
  %480 = vmatprep.mubr.bf16.mxu0 0
  %481 = vmatmul.mubr.bf16.gmra.mrb[0].mxu0 %v340
  %v482 = vpop.f32.mrb[0].mxu0
  %v483 = vadd.f32 0.0, %v482
  %v484 = vpop.f32.mrb[0].mxu0
  %v485 = vpop.f32.mrb[0].mxu0
  %v486 = vadd.f32 0.0, %v485
  %v487 = vpop.f32.mrb[0].mxu0
  %488 = vmatprep.mubr.bf16.mxu0 0
  %489 = vmatmul.mubr.bf16.gmra.mrb[0].mxu0 %v341
  %v490 = vpop.f32.mrb[0].mxu0
  %v491 = vadd.f32 0.0, %v490
  %v492 = vpop.f32.mrb[0].mxu0
  %v493 = vpop.f32.mrb[0].mxu0
  %v494 = vadd.f32 0.0, %v493
  %v495 = vpop.f32.mrb[0].mxu0
  %496 = vmatprep.mubr.bf16.mxu0 0
  %497 = vmatmul.mubr.bf16.gmra.mrb[0].mxu0 %v342
  %v498 = vpop.f32.mrb[0].mxu0
  %v499 = vadd.f32 0.0, %v498
  %v500 = vpop.f32.mrb[0].mxu0
  %v501 = vpop.f32.mrb[0].mxu0
  %v502 = vadd.f32 0.0, %v501
  %v503 = vpop.f32.mrb[0].mxu0
  %504 = vmatprep.mubr.bf16.mxu0 0
  %505 = vmatmul.mubr.bf16.gmra.mrb[0].mxu0 %v343
  %v506 = vpop.f32.mrb[0].mxu0
  %v507 = vadd.f32 0.0, %v506
  %v508 = vpop.f32.mrb[0].mxu0
  %v509 = vpop.f32.mrb[0].mxu0
  %v510 = vadd.f32 0.0, %v509
  %v511 = vpop.f32.mrb[0].mxu0
  %512 = vmatprep.mubr.bf16.mxu0 0
  %513 = vmatmul.mubr.bf16.gmra.mrb[0].mxu0 %v344
  %v514 = vpop.f32.mrb[0].mxu0
  %v515 = vadd.f32 0.0, %v514
  %v516 = vpop.f32.mrb[0].mxu0
  %v517 = vpop.f32.mrb[0].mxu0
  %v518 = vadd.f32 0.0, %v517
  %v519 = vpop.f32.mrb[0].mxu0
  %520 = vmatprep.mubr.bf16.mxu0 0
  %521 = vmatmul.mubr.bf16.gmra.mrb[0].mxu0 %v345
  %v522 = vpop.f32.mrb[0].mxu0
  %v523 = vadd.f32 0.0, %v522
  %v524 = vpop.f32.mrb[0].mxu0
  %v525 = vpop.f32.mrb[0].mxu0
  %v526 = vadd.f32 0.0, %v525
  %v527 = vpop.f32.mrb[0].mxu0
  %528 = vmatprep.mubr.bf16.mxu0 0
  %529 = vmatmul.mubr.bf16.gmra.mrb[0].mxu0 %v346
  %v530 = vpop.f32.mrb[0].mxu0
  %v531 = vadd.f32 0.0, %v530
  %v532 = vpop.f32.mrb[0].mxu0
  %v533 = vpop.f32.mrb[0].mxu0
  %v534 = vadd.f32 0.0, %v533
  %v535 = vpop.f32.mrb[0].mxu0
  %536 = vmatprep.mubr.bf16.mxu0 0
  %537 = vmatmul.mubr.bf16.gmra.mrb[0].mxu0 %v347
  %v538 = vpop.f32.mrb[0].mxu0
  %v539 = vadd.f32 0.0, %v538
  %v540 = vpop.f32.mrb[0].mxu0
  %v541 = vpop.f32.mrb[0].mxu0
  %v542 = vadd.f32 0.0, %v541
  %v543 = vpop.f32.mrb[0].mxu0
  %544 = vmatprep.mubr.bf16.mxu0 0
  %545 = vmatmul.mubr.bf16.gmra.mrb[0].mxu0 %v348
  %v546 = vpop.f32.mrb[0].mxu0
  %v547 = vadd.f32 0.0, %v546
  %v548 = vpop.f32.mrb[0].mxu0
  %v549 = vpop.f32.mrb[0].mxu0
  %v550 = vadd.f32 0.0, %v549
  %v551 = vpop.f32.mrb[0].mxu0
  %552 = vmatprep.mubr.bf16.mxu0 0
  %553 = vmatmul.mubr.bf16.gmra.mrb[0].mxu0 %v349
  %v554 = vpop.f32.mrb[0].mxu0
  %v555 = vadd.f32 0.0, %v554
  %v556 = vpop.f32.mrb[0].mxu0
  %v557 = vpop.f32.mrb[0].mxu0
  %v558 = vadd.f32 0.0, %v557
  %v559 = vpop.f32.mrb[0].mxu0
  %560 = vmatprep.mubr.bf16.mxu0 0
  %561 = vmatmul.mubr.bf16.gmra.mrb[0].mxu0 %v350
  %v562 = vpop.f32.mrb[0].mxu0
  %v563 = vadd.f32 0.0, %v562
  %v564 = vpop.f32.mrb[0].mxu0
  %v565 = vpop.f32.mrb[0].mxu0
  %v566 = vadd.f32 0.0, %v565
  %v567 = vpop.f32.mrb[0].mxu0
  %568 = vmatprep.mubr.bf16.mxu0 0
  %569 = vmatmul.mubr.bf16.gmra.mrb[0].mxu0 %v351
  %v570 = vpop.f32.mrb[0].mxu0
  %v571 = vadd.f32 0.0, %v570
  %v572 = vpop.f32.mrb[0].mxu0
  %v573 = vpop.f32.mrb[0].mxu0
  %v574 = vadd.f32 0.0, %v573
  %v575 = vpop.f32.mrb[0].mxu0
  %576 = vdwg.mxu0
  %v577 = vpack.c.bf16 %v454, %v451
  %v578 = vpack.c.bf16 %v462, %v459
  %v579 = vpack.c.bf16 %v470, %v467
  %v580 = vpack.c.bf16 %v478, %v475
  %v581 = vpack.c.bf16 %v486, %v483
  %v582 = vpack.c.bf16 %v494, %v491
  %v583 = vpack.c.bf16 %v502, %v499
  %v584 = vpack.c.bf16 %v510, %v507
  %v585 = vpack.c.bf16 %v518, %v515
  %v586 = vpack.c.bf16 %v526, %v523
  %v587 = vpack.c.bf16 %v534, %v531
  %v588 = vpack.c.bf16 %v542, %v539
  %v589 = vpack.c.bf16 %v550, %v547
  %v590 = vpack.c.bf16 %v558, %v555
  %v591 = vpack.c.bf16 %v566, %v563
  %v592 = vpack.c.bf16 %v574, %v571
  %v593 = vld [vmem:[%s4] sm:$0x1]
  %v595 = vpack.i.b16 %v593, %v593
  %v597 = vlaneseq
  %v598 = vshrl.u32 %v597, 7
  %v599 = vsub.s32 0, %v598
  %v600 = vrot.slane %v595, %v599
  %v601 = vadd.bf16 %v577, %v600
  %v602 = vadd.bf16 %v578, %v600
  %v603 = vadd.bf16 %v579, %v600
  %v604 = vadd.bf16 %v580, %v600
  %v605 = vadd.bf16 %v581, %v600
  %v606 = vadd.bf16 %v582, %v600
  %v607 = vadd.bf16 %v583, %v600
  %v608 = vadd.bf16 %v584, %v600
  %v609 = vadd.bf16 %v585, %v600
  %v610 = vadd.bf16 %v586, %v600
  %v611 = vadd.bf16 %v587, %v600
  %v612 = vadd.bf16 %v588, %v600
  %v613 = vadd.bf16 %v589, %v600
  %v614 = vadd.bf16 %v590, %v600
  %v615 = vadd.bf16 %v591, %v600
  %v616 = vadd.bf16 %v592, %v600
  %v617 = vmax.bf16 %v601, 0
  %v618 = vmax.bf16 %v602, 0
  %v619 = vmax.bf16 %v603, 0
  %v620 = vmax.bf16 %v604, 0
  %v621 = vmax.bf16 %v605, 0
  %v622 = vmax.bf16 %v606, 0
  %v623 = vmax.bf16 %v607, 0
  %v624 = vmax.bf16 %v608, 0
  %v625 = vmax.bf16 %v609, 0
  %v626 = vmax.bf16 %v610, 0
  %v627 = vmax.bf16 %v611, 0
  %v628 = vmax.bf16 %v612, 0
  %v629 = vmax.bf16 %v613, 0
  %v630 = vmax.bf16 %v614, 0
  %v631 = vmax.bf16 %v615, 0
  %v632 = vmax.bf16 %v616, 0
  %v633 = vld [vmem:[%s5] sm:$0xf]
  %v634 = vld [vmem:[%s5 + $0x4] sm:$0xf]
  %v635 = vld [vmem:[%s5 + $0x8] sm:$0xf]
  %v636 = vld [vmem:[%s5 + $0xc] sm:$0xf]
  %v637 = vld [vmem:[%s5 + $0x10] sm:$0xf]
  %v638 = vld [vmem:[%s5 + $0x14] sm:$0xf]
  %v639 = vld [vmem:[%s5 + $0x18] sm:$0xf]
  %v640 = vld [vmem:[%s5 + $0x1c] sm:$0xf]
  %v641 = vld [vmem:[%s5 + $0x20] sm:$0xf]
  %v642 = vld [vmem:[%s5 + $0x24] sm:$0xf]
  %v643 = vld [vmem:[%s5 + $0x28] sm:$0xf]
  %v644 = vld [vmem:[%s5 + $0x2c] sm:$0xf]
  %v645 = vld [vmem:[%s5 + $0x30] sm:$0xf]
  %v646 = vld [vmem:[%s5 + $0x34] sm:$0xf]
  %v647 = vld [vmem:[%s5 + $0x38] sm:$0xf]
  %v648 = vld [vmem:[%s5 + $0x3c] sm:$0xf]
  %v665 = vunpack.c.l.b16 %v633
  %v666 = vunpack.c.l.b16 %v634
  %v667 = vunpack.c.l.b16 %v635
  %v668 = vunpack.c.l.b16 %v636
  %v669 = vunpack.c.l.b16 %v637
  %v670 = vunpack.c.l.b16 %v638
  %v671 = vunpack.c.l.b16 %v639
  %v672 = vunpack.c.l.b16 %v640
  %v673 = vunpack.c.l.b16 %v641
  %v674 = vunpack.c.l.b16 %v642
  %v675 = vunpack.c.l.b16 %v643
  %v676 = vunpack.c.l.b16 %v644
  %v677 = vunpack.c.l.b16 %v645
  %v678 = vunpack.c.l.b16 %v646
  %v679 = vunpack.c.l.b16 %v647
  %v680 = vunpack.c.l.b16 %v648
  %v681 = vpack.c.b16 %v666, %v665
  %v682 = vpack.c.b16 %v668, %v667
  %v683 = vpack.c.b16 %v670, %v669
  %v684 = vpack.c.b16 %v672, %v671
  %v685 = vpack.c.b16 %v674, %v673
  %v686 = vpack.c.b16 %v676, %v675
  %v687 = vpack.c.b16 %v678, %v677
  %v688 = vpack.c.b16 %v680, %v679
  %697 = vmatprep.subr.bf16.mxu0 0
  %698 = vmatpush1.bf16.msra.mxu0 %v681
  %699 = vmatprep.subr.bf16.mxu0 0
  %700 = vmatpush1.bf16.msra.mxu0 %v682
  %701 = vmatprep.subr.bf16.mxu0 0
  %702 = vmatpush1.bf16.msra.mxu0 %v683
  %703 = vmatprep.subr.bf16.mxu0 0
  %704 = vmatpush1.bf16.msra.mxu0 %v684
  %705 = vmatprep.subr.bf16.mxu0 0
  %706 = vmatpush1.bf16.msra.mxu0 %v685
  %707 = vmatprep.subr.bf16.mxu0 0
  %708 = vmatpush1.bf16.msra.mxu0 %v686
  %709 = vmatprep.subr.bf16.mxu0 0
  %710 = vmatpush1.bf16.msra.mxu0 %v687
  %711 = vmatprep.subr.bf16.mxu0 0
  %712 = vmatpush1.bf16.msra.mxu0 %v688
  %713 = vmatprep.subr.bf16.mxu0 0
  %714 = vmatpush1.bf16.msra.mxu0 0
  %715 = vmatprep.subr.bf16.mxu0 0
  %716 = vmatpush1.bf16.msra.mxu0 0
  %717 = vmatprep.subr.bf16.mxu0 0
  %718 = vmatpush1.bf16.msra.mxu0 0
  %719 = vmatprep.subr.bf16.mxu0 0
  %720 = vmatpush1.bf16.msra.mxu0 0
  %721 = vmatprep.subr.bf16.mxu0 0
  %722 = vmatpush1.bf16.msra.mxu0 0
  %723 = vmatprep.subr.bf16.mxu0 0
  %724 = vmatpush1.bf16.msra.mxu0 0
  %725 = vmatprep.subr.bf16.mxu0 0
  %726 = vmatpush1.bf16.msra.mxu0 0
  %727 = vmatprep.subr.bf16.mxu0 0
  %728 = vmatpush1.bf16.msra.mxu0 0
  %729 = vmatprep.mubr.bf16.mxu0 0
  %730 = vmatmul.mubr.bf16.gmra.mrb[0].mxu0 %v617
  %v731 = vpop.f32.mrb[0].mxu0
  %v732 = vadd.f32 0.0, %v731
  %v733 = vpop.f32.mrb[0].mxu0
  %v734 = vpop.f32.mrb[0].mxu0
  %v735 = vadd.f32 0.0, %v734
  %v736 = vpop.f32.mrb[0].mxu0
  %737 = vmatprep.mubr.bf16.mxu0 0
  %738 = vmatmul.mubr.bf16.gmra.mrb[0].mxu0 %v618
  %v739 = vpop.f32.mrb[0].mxu0
  %v740 = vadd.f32 0.0, %v739
  %v741 = vpop.f32.mrb[0].mxu0
  %v742 = vpop.f32.mrb[0].mxu0
  %v743 = vadd.f32 0.0, %v742
  %v744 = vpop.f32.mrb[0].mxu0
  %745 = vmatprep.mubr.bf16.mxu0 0
  %746 = vmatmul.mubr.bf16.gmra.mrb[0].mxu0 %v619
  %v747 = vpop.f32.mrb[0].mxu0
  %v748 = vadd.f32 0.0, %v747
  %v749 = vpop.f32.mrb[0].mxu0
  %v750 = vpop.f32.mrb[0].mxu0
  %v751 = vadd.f32 0.0, %v750
  %v752 = vpop.f32.mrb[0].mxu0
  %753 = vmatprep.mubr.bf16.mxu0 0
  %754 = vmatmul.mubr.bf16.gmra.mrb[0].mxu0 %v620
  %v755 = vpop.f32.mrb[0].mxu0
  %v756 = vadd.f32 0.0, %v755
  %v757 = vpop.f32.mrb[0].mxu0
  %v758 = vpop.f32.mrb[0].mxu0
  %v759 = vadd.f32 0.0, %v758
  %v760 = vpop.f32.mrb[0].mxu0
  %761 = vmatprep.mubr.bf16.mxu0 0
  %762 = vmatmul.mubr.bf16.gmra.mrb[0].mxu0 %v621
  %v763 = vpop.f32.mrb[0].mxu0
  %v764 = vadd.f32 0.0, %v763
  %v765 = vpop.f32.mrb[0].mxu0
  %v766 = vpop.f32.mrb[0].mxu0
  %v767 = vadd.f32 0.0, %v766
  %v768 = vpop.f32.mrb[0].mxu0
  %769 = vmatprep.mubr.bf16.mxu0 0
  %770 = vmatmul.mubr.bf16.gmra.mrb[0].mxu0 %v622
  %v771 = vpop.f32.mrb[0].mxu0
  %v772 = vadd.f32 0.0, %v771
  %v773 = vpop.f32.mrb[0].mxu0
  %v774 = vpop.f32.mrb[0].mxu0
  %v775 = vadd.f32 0.0, %v774
  %v776 = vpop.f32.mrb[0].mxu0
  %777 = vmatprep.mubr.bf16.mxu0 0
  %778 = vmatmul.mubr.bf16.gmra.mrb[0].mxu0 %v623
  %v779 = vpop.f32.mrb[0].mxu0
  %v780 = vadd.f32 0.0, %v779
  %v781 = vpop.f32.mrb[0].mxu0
  %v782 = vpop.f32.mrb[0].mxu0
  %v783 = vadd.f32 0.0, %v782
  %v784 = vpop.f32.mrb[0].mxu0
  %785 = vmatprep.mubr.bf16.mxu0 0
  %786 = vmatmul.mubr.bf16.gmra.mrb[0].mxu0 %v624
  %v787 = vpop.f32.mrb[0].mxu0
  %v788 = vadd.f32 0.0, %v787
  %v789 = vpop.f32.mrb[0].mxu0
  %v790 = vpop.f32.mrb[0].mxu0
  %v791 = vadd.f32 0.0, %v790
  %v792 = vpop.f32.mrb[0].mxu0
  %793 = vmatprep.mubr.bf16.mxu0 0
  %794 = vmatmul.mubr.bf16.gmra.mrb[0].mxu0 %v625
  %v795 = vpop.f32.mrb[0].mxu0
  %v796 = vadd.f32 0.0, %v795
  %v797 = vpop.f32.mrb[0].mxu0
  %v798 = vpop.f32.mrb[0].mxu0
  %v799 = vadd.f32 0.0, %v798
  %v800 = vpop.f32.mrb[0].mxu0
  %801 = vmatprep.mubr.bf16.mxu0 0
  %802 = vmatmul.mubr.bf16.gmra.mrb[0].mxu0 %v626
  %v803 = vpop.f32.mrb[0].mxu0
  %v804 = vadd.f32 0.0, %v803
  %v805 = vpop.f32.mrb[0].mxu0
  %v806 = vpop.f32.mrb[0].mxu0
  %v807 = vadd.f32 0.0, %v806
  %v808 = vpop.f32.mrb[0].mxu0
  %809 = vmatprep.mubr.bf16.mxu0 0
  %810 = vmatmul.mubr.bf16.gmra.mrb[0].mxu0 %v627
  %v811 = vpop.f32.mrb[0].mxu0
  %v812 = vadd.f32 0.0, %v811
  %v813 = vpop.f32.mrb[0].mxu0
  %v814 = vpop.f32.mrb[0].mxu0
  %v815 = vadd.f32 0.0, %v814
  %v816 = vpop.f32.mrb[0].mxu0
  %817 = vmatprep.mubr.bf16.mxu0 0
  %818 = vmatmul.mubr.bf16.gmra.mrb[0].mxu0 %v628
  %v819 = vpop.f32.mrb[0].mxu0
  %v820 = vadd.f32 0.0, %v819
  %v821 = vpop.f32.mrb[0].mxu0
  %v822 = vpop.f32.mrb[0].mxu0
  %v823 = vadd.f32 0.0, %v822
  %v824 = vpop.f32.mrb[0].mxu0
  %825 = vmatprep.mubr.bf16.mxu0 0
  %826 = vmatmul.mubr.bf16.gmra.mrb[0].mxu0 %v629
  %v827 = vpop.f32.mrb[0].mxu0
  %v828 = vadd.f32 0.0, %v827
  %v829 = vpop.f32.mrb[0].mxu0
  %v830 = vpop.f32.mrb[0].mxu0
  %v831 = vadd.f32 0.0, %v830
  %v832 = vpop.f32.mrb[0].mxu0
  %833 = vmatprep.mubr.bf16.mxu0 0
  %834 = vmatmul.mubr.bf16.gmra.mrb[0].mxu0 %v630
  %v835 = vpop.f32.mrb[0].mxu0
  %v836 = vadd.f32 0.0, %v835
  %v837 = vpop.f32.mrb[0].mxu0
  %v838 = vpop.f32.mrb[0].mxu0
  %v839 = vadd.f32 0.0, %v838
  %v840 = vpop.f32.mrb[0].mxu0
  %841 = vmatprep.mubr.bf16.mxu0 0
  %842 = vmatmul.mubr.bf16.gmra.mrb[0].mxu0 %v631
  %v843 = vpop.f32.mrb[0].mxu0
  %v844 = vadd.f32 0.0, %v843
  %v845 = vpop.f32.mrb[0].mxu0
  %v846 = vpop.f32.mrb[0].mxu0
  %v847 = vadd.f32 0.0, %v846
  %v848 = vpop.f32.mrb[0].mxu0
  %849 = vmatprep.mubr.bf16.mxu0 0
  %850 = vmatmul.mubr.bf16.gmra.mrb[0].mxu0 %v632
  %v851 = vpop.f32.mrb[0].mxu0
  %v852 = vadd.f32 0.0, %v851
  %v853 = vpop.f32.mrb[0].mxu0
  %v854 = vpop.f32.mrb[0].mxu0
  %v855 = vadd.f32 0.0, %v854
  %v856 = vpop.f32.mrb[0].mxu0
  %857 = vdwg.mxu0
  %v858 = vpack.c.bf16 %v735, %v732
  %v859 = vpack.c.bf16 %v743, %v740
  %v860 = vpack.c.bf16 %v751, %v748
  %v861 = vpack.c.bf16 %v759, %v756
  %v862 = vpack.c.bf16 %v767, %v764
  %v863 = vpack.c.bf16 %v775, %v772
  %v864 = vpack.c.bf16 %v783, %v780
  %v865 = vpack.c.bf16 %v791, %v788
  %v866 = vpack.c.bf16 %v799, %v796
  %v867 = vpack.c.bf16 %v807, %v804
  %v868 = vpack.c.bf16 %v815, %v812
  %v869 = vpack.c.bf16 %v823, %v820
  %v870 = vpack.c.bf16 %v831, %v828
  %v871 = vpack.c.bf16 %v839, %v836
  %v872 = vpack.c.bf16 %v847, %v844
  %v873 = vpack.c.bf16 %v855, %v852
  %v874 = vld [vmem:[%s6] sm:$0x1]
  %v876 = vpack.i.b16 %v874, %v874
  %v878 = vlaneseq
  %v879 = vshrl.u32 %v878, 7
  %v880 = vsub.s32 0, %v879
  %v881 = vrot.slane %v876, %v880
  %v882 = vadd.bf16 %v858, %v881
  %v883 = vadd.bf16 %v859, %v881
  %v884 = vadd.bf16 %v860, %v881
  %v885 = vadd.bf16 %v861, %v881
  %v886 = vadd.bf16 %v862, %v881
  %v887 = vadd.bf16 %v863, %v881
  %v888 = vadd.bf16 %v864, %v881
  %v889 = vadd.bf16 %v865, %v881
  %v890 = vadd.bf16 %v866, %v881
  %v891 = vadd.bf16 %v867, %v881
  %v892 = vadd.bf16 %v868, %v881
  %v893 = vadd.bf16 %v869, %v881
  %v894 = vadd.bf16 %v870, %v881
  %v895 = vadd.bf16 %v871, %v881
  %v896 = vadd.bf16 %v872, %v881
  %v897 = vadd.bf16 %v873, %v881
  %v898 = vmax.bf16 %v882, 0
  %v899 = vmax.bf16 %v883, 0
  %v900 = vmax.bf16 %v884, 0
  %v901 = vmax.bf16 %v885, 0
  %v902 = vmax.bf16 %v886, 0
  %v903 = vmax.bf16 %v887, 0
  %v904 = vmax.bf16 %v888, 0
  %v905 = vmax.bf16 %v889, 0
  %v906 = vmax.bf16 %v890, 0
  %v907 = vmax.bf16 %v891, 0
  %v908 = vmax.bf16 %v892, 0
  %v909 = vmax.bf16 %v893, 0
  %v910 = vmax.bf16 %v894, 0
  %v911 = vmax.bf16 %v895, 0
  %v912 = vmax.bf16 %v896, 0
  %v913 = vmax.bf16 %v897, 0
  %v914 = vld [vmem:[%s7] sm:$0xf]
  %v915 = vld [vmem:[%s7 + $0x4] sm:$0xf]
  %v916 = vld [vmem:[%s7 + $0x8] sm:$0xf]
  %v917 = vld [vmem:[%s7 + $0xc] sm:$0xf]
  %v918 = vld [vmem:[%s7 + $0x10] sm:$0xf]
  %v919 = vld [vmem:[%s7 + $0x14] sm:$0xf]
  %v920 = vld [vmem:[%s7 + $0x18] sm:$0xf]
  %v921 = vld [vmem:[%s7 + $0x1c] sm:$0xf]
  %v922 = vld [vmem:[%s7 + $0x20] sm:$0xf]
  %v923 = vld [vmem:[%s7 + $0x24] sm:$0xf]
  %v924 = vld [vmem:[%s7 + $0x28] sm:$0xf]
  %v925 = vld [vmem:[%s7 + $0x2c] sm:$0xf]
  %v926 = vld [vmem:[%s7 + $0x30] sm:$0xf]
  %v927 = vld [vmem:[%s7 + $0x34] sm:$0xf]
  %v928 = vld [vmem:[%s7 + $0x38] sm:$0xf]
  %v929 = vld [vmem:[%s7 + $0x3c] sm:$0xf]
  %v930 = vld [vmem:[%s8] sm:$0x1]
  %v932 = vlaneseq
  %v933 = vshrl.u32 %v932, 7
  %v934 = vsub.s32 0, %v933
  %v935 = vrot.slane %v930, %v934
  %v953 = vunpack.c.l.b16 %v914
  %v954 = vunpack.c.l.b16 %v915
  %v955 = vunpack.c.l.b16 %v916
  %v956 = vunpack.c.l.b16 %v917
  %v957 = vunpack.c.l.b16 %v918
  %v958 = vunpack.c.l.b16 %v919
  %v959 = vunpack.c.l.b16 %v920
  %v960 = vunpack.c.l.b16 %v921
  %v961 = vunpack.c.l.b16 %v922
  %v962 = vunpack.c.l.b16 %v923
  %v963 = vunpack.c.l.b16 %v924
  %v964 = vunpack.c.l.b16 %v925
  %v965 = vunpack.c.l.b16 %v926
  %v966 = vunpack.c.l.b16 %v927
  %v967 = vunpack.c.l.b16 %v928
  %v968 = vunpack.c.l.b16 %v929
  %v969 = vpack.c.b16 %v954, %v953
  %v970 = vpack.c.b16 %v956, %v955
  %v971 = vpack.c.b16 %v958, %v957
  %v972 = vpack.c.b16 %v960, %v959
  %v973 = vpack.c.b16 %v962, %v961
  %v974 = vpack.c.b16 %v964, %v963
  %v975 = vpack.c.b16 %v966, %v965
  %v976 = vpack.c.b16 %v968, %v967
  %985 = vmatprep.subr.bf16.mxu0 0
  %986 = vmatpush1.bf16.msra.mxu0 %v969
  %987 = vmatprep.subr.bf16.mxu0 0
  %988 = vmatpush1.bf16.msra.mxu0 %v970
  %989 = vmatprep.subr.bf16.mxu0 0
  %990 = vmatpush1.bf16.msra.mxu0 %v971
  %991 = vmatprep.subr.bf16.mxu0 0
  %992 = vmatpush1.bf16.msra.mxu0 %v972
  %993 = vmatprep.subr.bf16.mxu0 0
  %994 = vmatpush1.bf16.msra.mxu0 %v973
  %995 = vmatprep.subr.bf16.mxu0 0
  %996 = vmatpush1.bf16.msra.mxu0 %v974
  %997 = vmatprep.subr.bf16.mxu0 0
  %998 = vmatpush1.bf16.msra.mxu0 %v975
  %999 = vmatprep.subr.bf16.mxu0 0
  %1000 = vmatpush1.bf16.msra.mxu0 %v976
  %1001 = vmatprep.subr.bf16.mxu0 0
  %1002 = vmatpush1.bf16.msra.mxu0 0
  %1003 = vmatprep.subr.bf16.mxu0 0
  %1004 = vmatpush1.bf16.msra.mxu0 0
  %1005 = vmatprep.subr.bf16.mxu0 0
  %1006 = vmatpush1.bf16.msra.mxu0 0
  %1007 = vmatprep.subr.bf16.mxu0 0
  %1008 = vmatpush1.bf16.msra.mxu0 0
  %1009 = vmatprep.subr.bf16.mxu0 0
  %1010 = vmatpush1.bf16.msra.mxu0 0
  %1011 = vmatprep.subr.bf16.mxu0 0
  %1012 = vmatpush1.bf16.msra.mxu0 0
  %1013 = vmatprep.subr.bf16.mxu0 0
  %1014 = vmatpush1.bf16.msra.mxu0 0
  %1015 = vmatprep.subr.bf16.mxu0 0
  %1016 = vmatpush1.bf16.msra.mxu0 0
  %1017 = vmatprep.mubr.bf16.mxu0 0
  %1018 = vmatmul.mubr.bf16.gmra.mrb[0].mxu0 %v898
  %v1019 = vpop.f32.mrb[0].mxu0
  %v1020 = vadd.f32 %v935, %v1019
  %v1021 = vpop.f32.mrb[0].mxu0
  %v1022 = vpop.f32.mrb[0].mxu0
  %v1023 = vadd.f32 %v935, %v1022
  %v1024 = vpop.f32.mrb[0].mxu0
  %1025 = vmatprep.mubr.bf16.mxu0 0
  %1026 = vmatmul.mubr.bf16.gmra.mrb[0].mxu0 %v899
  %v1027 = vpop.f32.mrb[0].mxu0
  %v1028 = vadd.f32 %v935, %v1027
  %v1029 = vpop.f32.mrb[0].mxu0
  %v1030 = vpop.f32.mrb[0].mxu0
  %v1031 = vadd.f32 %v935, %v1030
  %v1032 = vpop.f32.mrb[0].mxu0
  %1033 = vmatprep.mubr.bf16.mxu0 0
  %1034 = vmatmul.mubr.bf16.gmra.mrb[0].mxu0 %v900
  %v1035 = vpop.f32.mrb[0].mxu0
  %v1036 = vadd.f32 %v935, %v1035
  %v1037 = vpop.f32.mrb[0].mxu0
  %v1038 = vpop.f32.mrb[0].mxu0
  %v1039 = vadd.f32 %v935, %v1038
  %v1040 = vpop.f32.mrb[0].mxu0
  %1041 = vmatprep.mubr.bf16.mxu0 0
  %1042 = vmatmul.mubr.bf16.gmra.mrb[0].mxu0 %v901
  %v1043 = vpop.f32.mrb[0].mxu0
  %v1044 = vadd.f32 %v935, %v1043
  %v1045 = vpop.f32.mrb[0].mxu0
  %v1046 = vpop.f32.mrb[0].mxu0
  %v1047 = vadd.f32 %v935, %v1046
  %v1048 = vpop.f32.mrb[0].mxu0
  %1049 = vmatprep.mubr.bf16.mxu0 0
  %1050 = vmatmul.mubr.bf16.gmra.mrb[0].mxu0 %v902
  %v1051 = vpop.f32.mrb[0].mxu0
  %v1052 = vadd.f32 %v935, %v1051
  %v1053 = vpop.f32.mrb[0].mxu0
  %v1054 = vpop.f32.mrb[0].mxu0
  %v1055 = vadd.f32 %v935, %v1054
  %v1056 = vpop.f32.mrb[0].mxu0
  %1057 = vmatprep.mubr.bf16.mxu0 0
  %1058 = vmatmul.mubr.bf16.gmra.mrb[0].mxu0 %v903
  %v1059 = vpop.f32.mrb[0].mxu0
  %v1060 = vadd.f32 %v935, %v1059
  %v1061 = vpop.f32.mrb[0].mxu0
  %v1062 = vpop.f32.mrb[0].mxu0
  %v1063 = vadd.f32 %v935, %v1062
  %v1064 = vpop.f32.mrb[0].mxu0
  %1065 = vmatprep.mubr.bf16.mxu0 0
  %1066 = vmatmul.mubr.bf16.gmra.mrb[0].mxu0 %v904
  %v1067 = vpop.f32.mrb[0].mxu0
  %v1068 = vadd.f32 %v935, %v1067
  %v1069 = vpop.f32.mrb[0].mxu0
  %v1070 = vpop.f32.mrb[0].mxu0
  %v1071 = vadd.f32 %v935, %v1070
  %v1072 = vpop.f32.mrb[0].mxu0
  %1073 = vmatprep.mubr.bf16.mxu0 0
  %1074 = vmatmul.mubr.bf16.gmra.mrb[0].mxu0 %v905
  %v1075 = vpop.f32.mrb[0].mxu0
  %v1076 = vadd.f32 %v935, %v1075
  %v1077 = vpop.f32.mrb[0].mxu0
  %v1078 = vpop.f32.mrb[0].mxu0
  %v1079 = vadd.f32 %v935, %v1078
  %v1080 = vpop.f32.mrb[0].mxu0
  %1081 = vmatprep.mubr.bf16.mxu0 0
  %1082 = vmatmul.mubr.bf16.gmra.mrb[0].mxu0 %v906
  %v1083 = vpop.f32.mrb[0].mxu0
  %v1084 = vadd.f32 %v935, %v1083
  %v1085 = vpop.f32.mrb[0].mxu0
  %v1086 = vpop.f32.mrb[0].mxu0
  %v1087 = vadd.f32 %v935, %v1086
  %v1088 = vpop.f32.mrb[0].mxu0
  %1089 = vmatprep.mubr.bf16.mxu0 0
  %1090 = vmatmul.mubr.bf16.gmra.mrb[0].mxu0 %v907
  %v1091 = vpop.f32.mrb[0].mxu0
  %v1092 = vadd.f32 %v935, %v1091
  %v1093 = vpop.f32.mrb[0].mxu0
  %v1094 = vpop.f32.mrb[0].mxu0
  %v1095 = vadd.f32 %v935, %v1094
  %v1096 = vpop.f32.mrb[0].mxu0
  %1097 = vmatprep.mubr.bf16.mxu0 0
  %1098 = vmatmul.mubr.bf16.gmra.mrb[0].mxu0 %v908
  %v1099 = vpop.f32.mrb[0].mxu0
  %v1100 = vadd.f32 %v935, %v1099
  %v1101 = vpop.f32.mrb[0].mxu0
  %v1102 = vpop.f32.mrb[0].mxu0
  %v1103 = vadd.f32 %v935, %v1102
  %v1104 = vpop.f32.mrb[0].mxu0
  %1105 = vmatprep.mubr.bf16.mxu0 0
  %1106 = vmatmul.mubr.bf16.gmra.mrb[0].mxu0 %v909
  %v1107 = vpop.f32.mrb[0].mxu0
  %v1108 = vadd.f32 %v935, %v1107
  %v1109 = vpop.f32.mrb[0].mxu0
  %v1110 = vpop.f32.mrb[0].mxu0
  %v1111 = vadd.f32 %v935, %v1110
  %v1112 = vpop.f32.mrb[0].mxu0
  %1113 = vmatprep.mubr.bf16.mxu0 0
  %1114 = vmatmul.mubr.bf16.gmra.mrb[0].mxu0 %v910
  %v1115 = vpop.f32.mrb[0].mxu0
  %v1116 = vadd.f32 %v935, %v1115
  %v1117 = vpop.f32.mrb[0].mxu0
  %v1118 = vpop.f32.mrb[0].mxu0
  %v1119 = vadd.f32 %v935, %v1118
  %v1120 = vpop.f32.mrb[0].mxu0
  %1121 = vmatprep.mubr.bf16.mxu0 0
  %1122 = vmatmul.mubr.bf16.gmra.mrb[0].mxu0 %v911
  %v1123 = vpop.f32.mrb[0].mxu0
  %v1124 = vadd.f32 %v935, %v1123
  %v1125 = vpop.f32.mrb[0].mxu0
  %v1126 = vpop.f32.mrb[0].mxu0
  %v1127 = vadd.f32 %v935, %v1126
  %v1128 = vpop.f32.mrb[0].mxu0
  %1129 = vmatprep.mubr.bf16.mxu0 0
  %1130 = vmatmul.mubr.bf16.gmra.mrb[0].mxu0 %v912
  %v1131 = vpop.f32.mrb[0].mxu0
  %v1132 = vadd.f32 %v935, %v1131
  %v1133 = vpop.f32.mrb[0].mxu0
  %v1134 = vpop.f32.mrb[0].mxu0
  %v1135 = vadd.f32 %v935, %v1134
  %v1136 = vpop.f32.mrb[0].mxu0
  %1137 = vmatprep.mubr.bf16.mxu0 0
  %1138 = vmatmul.mubr.bf16.gmra.mrb[0].mxu0 %v913
  %v1139 = vpop.f32.mrb[0].mxu0
  %v1140 = vadd.f32 %v935, %v1139
  %v1141 = vpop.f32.mrb[0].mxu0
  %v1142 = vpop.f32.mrb[0].mxu0
  %v1143 = vadd.f32 %v935, %v1142
  %v1144 = vpop.f32.mrb[0].mxu0
  %1145 = vdwg.mxu0
  %1146 = vst [vmem:[%s9] sm:$0xff] %v1020
  %1147 = vst [vmem:[%s9 + $0x8] sm:$0xff] %v1023
  %1148 = vst [vmem:[%s9 + $0x10] sm:$0xff] %v1028
  %1149 = vst [vmem:[%s9 + $0x18] sm:$0xff] %v1031
  %1150 = vst [vmem:[%s9 + $0x20] sm:$0xff] %v1036
  %1151 = vst [vmem:[%s9 + $0x28] sm:$0xff] %v1039
  %1152 = vst [vmem:[%s9 + $0x30] sm:$0xff] %v1044
  %1153 = vst [vmem:[%s9 + $0x38] sm:$0xff] %v1047
  %1154 = vst [vmem:[%s9 + $0x40] sm:$0xff] %v1052
  %1155 = vst [vmem:[%s9 + $0x48] sm:$0xff] %v1055
  %1156 = vst [vmem:[%s9 + $0x50] sm:$0xff] %v1060
  %1157 = vst [vmem:[%s9 + $0x58] sm:$0xff] %v1063
  %1158 = vst [vmem:[%s9 + $0x60] sm:$0xff] %v1068
  %1159 = vst [vmem:[%s9 + $0x68] sm:$0xff] %v1071
  %1160 = vst [vmem:[%s9 + $0x70] sm:$0xff] %v1076
  %1161 = vst [vmem:[%s9 + $0x78] sm:$0xff] %v1079
  %1162 = vst [vmem:[%s9 + $0x80] sm:$0xff] %v1084
  %1163 = vst [vmem:[%s9 + $0x88] sm:$0xff] %v1087
  %1164 = vst [vmem:[%s9 + $0x90] sm:$0xff] %v1092
  %1165 = vst [vmem:[%s9 + $0x98] sm:$0xff] %v1095
  %1166 = vst [vmem:[%s9 + $0xa0] sm:$0xff] %v1100
  %1167 = vst [vmem:[%s9 + $0xa8] sm:$0xff] %v1103
  %1168 = vst [vmem:[%s9 + $0xb0] sm:$0xff] %v1108
  %1169 = vst [vmem:[%s9 + $0xb8] sm:$0xff] %v1111
  %1170 = vst [vmem:[%s9 + $0xc0] sm:$0xff] %v1116
  %1171 = vst [vmem:[%s9 + $0xc8] sm:$0xff] %v1119
  %1172 = vst [vmem:[%s9 + $0xd0] sm:$0xff] %v1124
  %1173 = vst [vmem:[%s9 + $0xd8] sm:$0xff] %v1127
  %1174 = vst [vmem:[%s9 + $0xe0] sm:$0xff] %v1132
  %1175 = vst [vmem:[%s9 + $0xe8] sm:$0xff] %v1135
  %1176 = vst [vmem:[%s9 + $0xf0] sm:$0xff] %v1140
  %1177 = vst [vmem:[%s9 + $0xf8] sm:$0xff] %v1143
  // Predicated region
  $region38: #{deep_q_forward.1} parent=0 // pred_check
    _
  $region39: #{deep_q_forward.1} parent=0 // pred_check_branch
    %1179 = sbr.rel (0) target = $region41
  $region40: #{deep_q_forward.1} parent=0 // pred_region
    _
  $region41: #{deep_q_forward.1} parent=0 // pred_fallthru
    _
  // Predicated region
  $region42: #{deep_q_forward.1} parent=0 // pred_check
    _
  $region43: #{deep_q_forward.1} parent=0 // pred_check_branch
    %1181 = sbr.rel (0) target = $region45
  $region44: #{deep_q_forward.1} parent=0 // pred_region
    _
  $region45: #{deep_q_forward.1} parent=0 // pred_fallthru
    _

</llo_original>
